<compile_context>
chip_gen: v5e
topology: v5e:2x2
jax: 0.10.0
libtpu: 0.0.40
codegen_flags: <defaults>
</compile_context>

<pallas_src>
import functools

import jax
import jax.numpy as jnp
from jax.experimental import pallas as pl
from jax.experimental.pallas import tpu as pltpu

NEG_INF = -1e30


# ----------------------------------------------------------------------------
# helpers
# ----------------------------------------------------------------------------
def _pad_rows(x, mult):
    pad = (-x.shape[0]) % mult
    if pad:
        x = jnp.concatenate([x, jnp.zeros((pad,) + x.shape[1:], x.dtype)], 0)
    return x


# ----------------------------------------------------------------------------
# Row-tiled fused linear / 2-layer-MLP kernels
# ----------------------------------------------------------------------------
def _linear_kernel(x_ref, w_ref, b_ref, o_ref, *, relu):
    y = jnp.dot(x_ref[...], w_ref[...], preferred_element_type=jnp.float32)
    y = y + b_ref[...]
    if relu:
        y = jnp.maximum(y, 0.0)
    o_ref[...] = y


def linear(x, w, b, relu=False, row_tile=128):
    n = x.shape[0]
    xp = _pad_rows(x, row_tile)
    np_, f = xp.shape
    d = w.shape[1]
    y = pl.pallas_call(
        functools.partial(_linear_kernel, relu=relu),
        out_shape=jax.ShapeDtypeStruct((np_, d), jnp.float32),
        grid_spec=pltpu.PrefetchScalarGridSpec(
            num_scalar_prefetch=0,
            grid=(np_ // row_tile,),
            in_specs=[
                pl.BlockSpec((row_tile, f), lambda i: (i, 0)),
                pl.BlockSpec((f, d), lambda i: (0, 0)),
                pl.BlockSpec((1, d), lambda i: (0, 0)),
            ],
            out_specs=pl.BlockSpec((row_tile, d), lambda i: (i, 0)),
        ),
        compiler_params=pltpu.CompilerParams(
            dimension_semantics=("parallel",)),
    )(xp, w, b.reshape(1, -1))
    return y[:n]


def _mlp2_kernel(x_ref, w1_ref, b1_ref, w2_ref, b2_ref, o_ref):
    h = jnp.dot(x_ref[...], w1_ref[...], preferred_element_type=jnp.float32)
    h = jnp.maximum(h + b1_ref[...], 0.0)
    y = jnp.dot(h, w2_ref[...], preferred_element_type=jnp.float32)
    o_ref[...] = y + b2_ref[...]


def mlp2(x, w1, b1, w2, b2, row_tile=128):
    """y = relu(x @ w1 + b1) @ w2 + b2, fused into one pallas_call."""
    n = x.shape[0]
    xp = _pad_rows(x, row_tile)
    np_, f = xp.shape
    d1, d2 = w1.shape[1], w2.shape[1]
    y = pl.pallas_call(
        _mlp2_kernel,
        out_shape=jax.ShapeDtypeStruct((np_, d2), jnp.float32),
        grid_spec=pltpu.PrefetchScalarGridSpec(
            num_scalar_prefetch=0,
            grid=(np_ // row_tile,),
            in_specs=[
                pl.BlockSpec((row_tile, f), lambda i: (i, 0)),
                pl.BlockSpec((f, d1), lambda i: (0, 0)),
                pl.BlockSpec((1, d1), lambda i: (0, 0)),
                pl.BlockSpec((d1, d2), lambda i: (0, 0)),
                pl.BlockSpec((1, d2), lambda i: (0, 0)),
            ],
            out_specs=pl.BlockSpec((row_tile, d2), lambda i: (i, 0)),
        ),
        compiler_params=pltpu.CompilerParams(
            dimension_semantics=("parallel",)),
    )(xp, w1, b1.reshape(1, -1), w2, b2.reshape(1, -1))
    return y[:n]


# ----------------------------------------------------------------------------
# GAT layer kernel 1: per-node projection + attention terms (row-tiled)
# ----------------------------------------------------------------------------
def _gat_project_kernel(x_ref, w_ref, al_ref, ar_ref, z_ref, el_ref, er_ref,
                        *, num_heads, out_dim):
    z = jnp.dot(x_ref[...], w_ref[...], preferred_element_type=jnp.float32)
    z_ref[...] = z                                            # [tile, H*D]
    els, ers = [], []
    for h in range(num_heads):                                # static unroll
        zh = z[:, h * out_dim:(h + 1) * out_dim]              # [tile, D]
        els.append(jnp.sum(zh * al_ref[h:h + 1, :], axis=-1, keepdims=True))
        ers.append(jnp.sum(zh * ar_ref[h:h + 1, :], axis=-1, keepdims=True))
    el_ref[...] = jnp.concatenate(els, axis=-1)               # [tile, H]
    er_ref[...] = jnp.concatenate(ers, axis=-1)               # [tile, H]


def gat_project(h, w, a_l, a_r, row_tile=128):
    np_, f = h.shape
    num_heads, out_dim = a_l.shape
    return pl.pallas_call(
        functools.partial(_gat_project_kernel, num_heads=num_heads,
                          out_dim=out_dim),
        out_shape=(
            jax.ShapeDtypeStruct((np_, num_heads * out_dim), jnp.float32),
            jax.ShapeDtypeStruct((np_, num_heads), jnp.float32),
            jax.ShapeDtypeStruct((np_, num_heads), jnp.float32),
        ),
        grid_spec=pltpu.PrefetchScalarGridSpec(
            num_scalar_prefetch=0,
            grid=(np_ // row_tile,),
            in_specs=[
                pl.BlockSpec((row_tile, f), lambda i: (i, 0)),
                pl.BlockSpec((f, num_heads * out_dim), lambda i: (0, 0)),
                pl.BlockSpec((num_heads, out_dim), lambda i: (0, 0)),
                pl.BlockSpec((num_heads, out_dim), lambda i: (0, 0)),
            ],
            out_specs=(
                pl.BlockSpec((row_tile, num_heads * out_dim), lambda i: (i, 0)),
                pl.BlockSpec((row_tile, num_heads), lambda i: (i, 0)),
                pl.BlockSpec((row_tile, num_heads), lambda i: (i, 0)),
            ),
        ),
        compiler_params=pltpu.CompilerParams(
            dimension_semantics=("parallel",)),
    )(h, w, a_l, a_r)


# ----------------------------------------------------------------------------
# GAT layer kernel 2: tiled online-softmax attention aggregation
#   grid = (dst_tile [parallel], src_tile [arbitrary/reduction])
# ----------------------------------------------------------------------------
def _gat_attn_kernel(z_ref, elt_ref, er_ref, bias_ref, mb_ref, o_ref,
                     m_sc, l_sc, acc_sc, *, num_heads, out_dim):
    k = pl.program_id(1)

    @pl.when(k == 0)
    def _():
        m_sc[...] = jnp.full_like(m_sc, NEG_INF)
        l_sc[...] = jnp.zeros_like(l_sc)
        acc_sc[...] = jnp.zeros_like(acc_sc)

    z = z_ref[...]                                    # [tk, H*D] f32 (src)
    elt = elt_ref[...]                                # [H, tk]  src terms
    er = er_ref[...]                                  # [tq, H]  dst terms
    bias = bias_ref[...].astype(jnp.float32)          # [tq, tk] additive mask

    for h in range(num_heads):                        # static unroll
        zh = z[:, h * out_dim:(h + 1) * out_dim]      # [tk, D]
        s = er[:, h:h + 1] + elt[h:h + 1, :]          # [tq, tk]
        s = jnp.where(s > 0, s, 0.2 * s)              # LeakyReLU(0.2)
        s = s + bias                                  # masking (single pass)

        m_prev = m_sc[h]                              # [tq, 1]
        m_new = jnp.maximum(m_prev, jnp.max(s, axis=-1, keepdims=True))
        corr = jnp.exp(m_prev - m_new)
        p = jnp.exp(s - m_new)                        # unnormalized weights
        l_sc[h] = corr * l_sc[h] + jnp.sum(p, axis=-1, keepdims=True)
        acc_sc[h] = corr * acc_sc[h] + jnp.dot(
            p.astype(jnp.bfloat16), zh.astype(jnp.bfloat16),
            preferred_element_type=jnp.float32)
        m_sc[h] = m_new

    @pl.when(k == pl.num_programs(1) - 1)
    def _():
        inv_l = pl.reciprocal(l_sc[...], approx=True)     # [H, tq, 1]
        out = jnp.mean(acc_sc[...] * inv_l, axis=0)       # [tq, D] (head mean)
        o_ref[...] = out + mb_ref[...]                    # + mean-head bias


def gat_attention(z, el, er, mask_bias, mean_bias, num_heads, out_dim,
                  tq=128, tk=128):
    np_ = z.shape[0]
    assert np_ % tq == 0 and np_ % tk == 0
    elt = el.T                                        # [H, Np] lane-dense
    return pl.pallas_call(
        functools.partial(_gat_attn_kernel, num_heads=num_heads,
                          out_dim=out_dim),
        out_shape=jax.ShapeDtypeStruct((np_, out_dim), jnp.float32),
        grid_spec=pltpu.PrefetchScalarGridSpec(
            num_scalar_prefetch=0,
            grid=(np_ // tq, np_ // tk),
            in_specs=[
                pl.BlockSpec((tk, num_heads * out_dim), lambda q, k: (k, 0)),
                pl.BlockSpec((num_heads, tk), lambda q, k: (0, k)),
                pl.BlockSpec((tq, num_heads), lambda q, k: (q, 0)),
                pl.BlockSpec((tq, tk), lambda q, k: (q, k)),
                pl.BlockSpec((1, out_dim), lambda q, k: (0, 0)),
            ],
            out_specs=pl.BlockSpec((tq, out_dim), lambda q, k: (q, 0)),
            scratch_shapes=[
                pltpu.VMEM((num_heads, tq, 1), jnp.float32),   # running max
                pltpu.VMEM((num_heads, tq, 1), jnp.float32),   # running sum
                pltpu.VMEM((num_heads, tq, out_dim), jnp.float32),  # acc
            ],
        ),
        compiler_params=pltpu.CompilerParams(
            dimension_semantics=("parallel", "arbitrary"),
            vmem_limit_bytes=32 * 1024 * 1024),
    )(z, elt, er, mask_bias, mean_bias)


# ----------------------------------------------------------------------------
# Parameter init (deterministic, PyTorch-Linear-style uniform)
# ----------------------------------------------------------------------------
def init_linear(key, fan_in, fan_out):
    kw, kb = jax.random.split(key)
    bound = 1.0 / float(fan_in) ** 0.5
    w = jax.random.uniform(kw, (fan_in, fan_out), jnp.float32, -bound, bound)
    b = jax.random.uniform(kb, (fan_out,), jnp.float32, -bound, bound)
    return w, b


def init_gat_model(key, node_features, edge_features, hidden_features,
                   hidden_edge_features, num_layers, hidden_edge_scores,
                   nb_pos_enc, num_heads=3):
    hidden_node_features = hidden_edge_features
    keys = jax.random.split(key, 8 + 4 * num_layers)
    params = {}
    params["linear_pe"] = init_linear(keys[0], nb_pos_enc + 2, hidden_features)
    # linear1_node / linear2_node exist in __init__ but are unused in forward().
    params["linear1_node"] = init_linear(keys[1], node_features, hidden_node_features)
    params["linear2_node"] = init_linear(keys[2], hidden_node_features, hidden_features)
    params["linear1_edge"] = init_linear(keys[3], edge_features, hidden_edge_features)
    params["linear2_edge"] = init_linear(keys[4], hidden_edge_features, hidden_features)

    gat_layers = []
    for l in range(num_layers):
        kw, ka, kr, _ = jax.random.split(keys[5 + l], 4)
        scale = 1.0 / float(hidden_features) ** 0.5
        w = jax.random.uniform(kw, (hidden_features, num_heads * hidden_features),
                               jnp.float32, -scale, scale)
        a_l = jax.random.uniform(ka, (num_heads, hidden_features), jnp.float32, -scale, scale)
        a_r = jax.random.uniform(kr, (num_heads, hidden_features), jnp.float32, -scale, scale)
        bias = jnp.zeros((num_heads, hidden_features), jnp.float32)
        gat_layers.append((w, a_l, a_r, bias))
    params["gat_layers"] = gat_layers

    params["pred_W1"] = init_linear(keys[5 + num_layers], 3 * hidden_features,
                                    hidden_edge_scores)
    params["pred_W2"] = init_linear(keys[6 + num_layers], hidden_edge_scores, 1)
    return params


# ----------------------------------------------------------------------------
# Forward pass (directed=True path)
# ----------------------------------------------------------------------------
def gat_model_forward(params, src, dst, x, e, pe, num_nodes, tq=128, tk=128):
    del x  # forward() overwrites x with linear_pe(pe); node MLP is unused.

    # Pad node count to a multiple of the attention tile size.
    np_ = ((num_nodes + tq - 1) // tq) * tq
    pe_p = _pad_rows(pe, tq)

    # x = linear_pe(pe)
    h = linear(pe_p, *params["linear_pe"], row_tile=tq)

    # e = linear2_edge(relu(linear1_edge(e)))  — fused into one pallas_call.
    ef = mlp2(e, *params["linear1_edge"], *params["linear2_edge"])

    # directed=True: g = dgl.add_self_loop(graph).
    # Dense additive bf16 mask bias[dst, src]: 0 where edge/self-loop, -1e30 else.
    adj = jnp.zeros((np_, np_), jnp.bool_).at[dst, src].set(True)
    adj = jnp.logical_or(adj, jnp.eye(np_, dtype=jnp.bool_))
    mask_bias = jnp.where(adj, 0.0, NEG_INF).astype(jnp.bfloat16)

    num_heads, hidden = params["gat_layers"][0][1].shape

    # x, e = gnn(g, x, e)   (GAT layers update node features; e passes through)
    for (w, a_l, a_r, bias) in params["gat_layers"]:
        z, el, er = gat_project(h, w, a_l, a_r, row_tile=tq)
        mean_bias = jnp.mean(bias, axis=0, keepdims=True)     # hoisted head-mean bias
        h = gat_attention(z, el, er, mask_bias, mean_bias,
                          num_heads, hidden, tq=tq, tk=tk)

    # scores = predictor(graph, x, e)  on the ORIGINAL edges
    h_src = h[src]            # TODO(synk): edge gather stays in XLA glue
    h_dst = h[dst]
    data = jnp.concatenate([h_src, h_dst, ef], axis=1)
    scores = mlp2(data, *params["pred_W1"], *params["pred_W2"])  # fused W1+relu+W2
    return scores                                                # [E, 1]


# ----------------------------------------------------------------------------
if __name__ == "__main__":
    # Small synthetic configuration (tile-aligned: N=256, E=512).
    node_features = 2
    edge_features = 2
    hidden_features = 32
    hidden_edge_features = 16
    num_layers = 2
    hidden_edge_scores = 16
    nb_pos_enc = 8
    num_heads = 3
    N = 256         # nodes
    E = 512         # directed edges

    key = jax.random.PRNGKey(0)
    k_graph, k_x, k_e, k_pe, k_params = jax.random.split(key, 5)
    k_src, k_dst = jax.random.split(k_graph)

    src = jax.random.randint(k_src, (E,), 0, N)
    dst = jax.random.randint(k_dst, (E,), 0, N)
    x = jax.random.normal(k_x, (N, node_features), jnp.float32)
    e = jax.random.normal(k_e, (E, edge_features), jnp.float32)
    pe = jax.random.normal(k_pe, (N, nb_pos_enc + 2), jnp.float32)

    params = init_gat_model(k_params, node_features, edge_features,
                            hidden_features, hidden_edge_features, num_layers,
                            hidden_edge_scores, nb_pos_enc, num_heads)

    scores = gat_model_forward(params, src, dst, x, e, pe, N)
    scores = jax.block_until_ready(scores)
    assert scores.shape == (E, 1) and scores.dtype == jnp.float32
    assert bool(jnp.all(jnp.isfinite(scores)))
    print("KERNEL_OK")
</pallas_src>

<mosaic_0001>
module attributes {stable_mosaic.version = 11 : i64} {
  func.func @_linear_kernel(%arg0: i32, %arg1: memref<128x10xf32, #tpu.memory_space<vmem>>, %arg2: memref<10x32xf32, #tpu.memory_space<vmem>>, %arg3: memref<1x32xf32, #tpu.memory_space<vmem>>, %arg4: memref<128x32xf32, #tpu.memory_space<vmem>>) attributes {dimension_semantics = [#tpu.dimension_semantics<parallel>], iteration_bounds = array<i64: 2>, scalar_prefetch = 0 : i64, scratch_operands = 0 : i64, tpu.core_type = #tpu.core_type<tc>, window_params = [{transform_indices = @transform_0, window_bounds = array<i64: 128, 10>}, {pipeline_mode = #tpu.pipeline_mode<synchronous>, transform_indices = @transform_1, window_bounds = array<i64: 10, 32>}, {pipeline_mode = #tpu.pipeline_mode<synchronous>, transform_indices = @transform_2, window_bounds = array<i64: 1, 32>}, {transform_indices = @transform_3, window_bounds = array<i64: 128, 32>}]} {
    %c0 = arith.constant 0 : index
    %c0_0 = arith.constant 0 : index
    %0 = vector.load %arg1[%c0, %c0_0] : memref<128x10xf32, #tpu.memory_space<vmem>>, vector<128x10xf32>
    %c0_1 = arith.constant 0 : index
    %c0_2 = arith.constant 0 : index
    %1 = vector.load %arg2[%c0_1, %c0_2] : memref<10x32xf32, #tpu.memory_space<vmem>>, vector<10x32xf32>
    %cst = arith.constant dense<0.000000e+00> : vector<128x32xf32>
    %2 = tpu.matmul %0, %1, %cst {dimension_numbers = #tpu.dot_dimension_numbers<[1], [0], [0], [1], [0, 0, 1, 1], [], []>} : vector<128x10xf32>, vector<10x32xf32>, vector<128x32xf32> -> vector<128x32xf32>
    %c0_3 = arith.constant 0 : index
    %c0_4 = arith.constant 0 : index
    %3 = vector.load %arg3[%c0_3, %c0_4] : memref<1x32xf32, #tpu.memory_space<vmem>>, vector<1x32xf32>
    %4 = vector.broadcast %3 : vector<1x32xf32> to vector<128x32xf32>
    %5 = arith.addf %2, %4 : vector<128x32xf32>
    %c0_5 = arith.constant 0 : index
    %c0_6 = arith.constant 0 : index
    %6 = vector.load %arg4[%c0_5, %c0_6] : memref<128x32xf32, #tpu.memory_space<vmem>>, vector<128x32xf32>
    tpu.vector_store %arg4[%c0_5, %c0_6], %5 {strides = array<i32>} : memref<128x32xf32, #tpu.memory_space<vmem>>, vector<128x32xf32>,
    return
  }
  func.func @transform_0(%arg0: i32) -> (i32, i32) {
    %c0_i32 = arith.constant 0 : i32
    %c0_i32_0 = arith.constant 0 : i32
    return %arg0, %c0_i32 : i32, i32
  }
  func.func @transform_1(%arg0: i32) -> (i32, i32) {
    %c0_i32 = arith.constant 0 : i32
    %c0_i32_0 = arith.constant 0 : i32
    %c0_i32_1 = arith.constant 0 : i32
    return %c0_i32, %c0_i32_0 : i32, i32
  }
  func.func @transform_2(%arg0: i32) -> (i32, i32) {
    %c0_i32 = arith.constant 0 : i32
    %c0_i32_0 = arith.constant 0 : i32
    %c0_i32_1 = arith.constant 0 : i32
    return %c0_i32, %c0_i32_0 : i32, i32
  }
  func.func @transform_3(%arg0: i32) -> (i32, i32) {
    %c0_i32 = arith.constant 0 : i32
    %c0_i32_0 = arith.constant 0 : i32
    return %arg0, %c0_i32 : i32, i32
  }
}

</mosaic_0001>

<llo_original>
// kernel: tpu_custom_call.1
$region0: #{tpu_custom_call.1}
  #allocation0 [shape = 'u32[]', space=smem, size = 0x4, offset = 0x4, fixed_abs, tag = 'smem constant byte address 0x4 - core index']
  #allocation1 [shape = 'u32[72,128]{1,0:T(1,128)}', space=vmem, size = 0x9000, scoped, tag = 'internal scratch']
  %s0 = inlined_call_operand.vmem [shape: f32[256,10], index: 0, kind: input, shape index: {}]
  %s1 = inlined_call_operand.vmem [shape: f32[10,32], index: 1, kind: input, shape index: {}]
  %s2 = inlined_call_operand.vmem [shape: f32[1,32], index: 2, kind: input, shape index: {}]
  %s3 = inlined_call_operand.vmem [shape: f32[256,32], index: 3, kind: output, shape index: {}]
  %s4 = sld [smem:[#allocation0]]
  $region45: #{tpu_custom_call.1} parent=0
    _
  %s6 = ssub.s32 1, %s4
  %s7 = scalar_select 0, %s6, %s4
  loop: start=0, step=1, limit=4
  $region2: #{tpu_custom_call.1} parent=0 // loop_pre_header
    _
  $region3: #{tpu_custom_call.1} parent=0 // loop_header
    %s9 = sphi 0, %s13
    %p10 = scmp.ge.s32.totalorder %s9, 4
    %s19 = sphi 0, %s21
    %s22 = sphi 0, %s19
    %s23 = sphi 0, %s22
    %s39 = sphi 0, %s23
    %s43 = sphi 0, %s43
    %s45 = sphi 0, %s43
    %s46 = sphi 0, %s45
    %s60 = sphi 0, %s46
    %s64 = sphi 0, %s64
    %s66 = sphi 0, %s64
    %s67 = sphi 0, %s66
    %s81 = sphi 0, %s67
    %s87 = sphi 0, %s89
    %s90 = sphi 0, %s87
    %s91 = sphi 0, %s90
    %s107 = sphi 0, %s91
  $region4: #{tpu_custom_call.1} parent=0 // loop_header_branch
    %12 = sbr.rel (%p10) target = $region8
  $region5: #{tpu_custom_call.1} parent=0 // loop_body
    %s14 = ssub.s32 %s9, 1
    %s15 = ssub.s32 %s9, 2
    %s16 = sadd.s32 %s9, 1
    %s17 = ssub.s32 %s9, %s16
    %p18 = scmp.eq.s32.totalorder %s17, 0
    %s20 = sadd.s32 %s19, 1
    %s21 = scalar_select %p18, %s19, %s20
    %p24 = pneg %p18
    %p25 = scmp.eq.s32.totalorder %s9, 1
    %p26 = por %p24, %p25
    %p27 = scmp.ne.s32.totalorder %s19, %s22
    %p28 = scmp.eq.s32.totalorder %s9, 0
    %p29 = por %p27, %p28
    %p30 = scmp.ne.s32.totalorder %s19, %s22
    %p31 = scmp.eq.s32.totalorder %s14, 1
    %p32 = por %p30, %p31
    %p33 = scmp.ne.s32.totalorder %s22, %s23
    %p34 = scmp.eq.s32.totalorder %s14, 0
    %p35 = por %p33, %p34
    %p36 = scmp.ne.s32.totalorder %s22, %s23
    %p37 = scmp.eq.s32.totalorder %s15, 1
    %p38 = por %p36, %p37
    %p40 = scmp.ne.s32.totalorder %s23, %s39
    %p41 = scmp.eq.s32.totalorder %s15, 0
    %p42 = por %p40, %p41
    %s44 = sadd.s32 %s43, 1
    %p47 = scmp.eq.s32.totalorder %s9, 1
    %p48 = scmp.ne.s32.totalorder %s43, %s45
    %p49 = scmp.eq.s32.totalorder %s9, 0
    %p50 = por %p48, %p49
    %p51 = scmp.ne.s32.totalorder %s43, %s45
    %p52 = scmp.eq.s32.totalorder %s14, 1
    %p53 = por %p51, %p52
    %p54 = scmp.ne.s32.totalorder %s45, %s46
    %p55 = scmp.eq.s32.totalorder %s14, 0
    %p56 = por %p54, %p55
    %p57 = scmp.ne.s32.totalorder %s45, %s46
    %p58 = scmp.eq.s32.totalorder %s15, 1
    %p59 = por %p57, %p58
    %p61 = scmp.ne.s32.totalorder %s46, %s60
    %p62 = scmp.eq.s32.totalorder %s15, 0
    %p63 = por %p61, %p62
    %s65 = sadd.s32 %s64, 1
    %p68 = scmp.eq.s32.totalorder %s9, 1
    %p69 = scmp.ne.s32.totalorder %s64, %s66
    %p70 = scmp.eq.s32.totalorder %s9, 0
    %p71 = por %p69, %p70
    %p72 = scmp.ne.s32.totalorder %s64, %s66
    %p73 = scmp.eq.s32.totalorder %s14, 1
    %p74 = por %p72, %p73
    %p75 = scmp.ne.s32.totalorder %s66, %s67
    %p76 = scmp.eq.s32.totalorder %s14, 0
    %p77 = por %p75, %p76
    %p78 = scmp.ne.s32.totalorder %s66, %s67
    %p79 = scmp.eq.s32.totalorder %s15, 1
    %p80 = por %p78, %p79
    %p82 = scmp.ne.s32.totalorder %s67, %s81
    %p83 = scmp.eq.s32.totalorder %s15, 0
    %p84 = por %p82, %p83
    %s85 = ssub.s32 %s9, %s16
    %p86 = scmp.eq.s32.totalorder %s85, 0
    %s88 = sadd.s32 %s87, 1
    %s89 = scalar_select %p86, %s87, %s88
    %p92 = pneg %p86
    %p93 = scmp.eq.s32.totalorder %s9, 1
    %p94 = por %p92, %p93
    %p95 = scmp.ne.s32.totalorder %s87, %s90
    %p96 = scmp.eq.s32.totalorder %s9, 0
    %p97 = por %p95, %p96
    %p98 = scmp.ne.s32.totalorder %s87, %s90
    %p99 = scmp.eq.s32.totalorder %s14, 1
    %p100 = por %p98, %p99
    %p101 = scmp.ne.s32.totalorder %s90, %s91
    %p102 = scmp.eq.s32.totalorder %s14, 0
    %p103 = por %p101, %p102
    %p104 = scmp.ne.s32.totalorder %s90, %s91
    %p105 = scmp.eq.s32.totalorder %s15, 1
    %p106 = por %p104, %p105
    %p108 = scmp.ne.s32.totalorder %s91, %s107
    %p109 = scmp.eq.s32.totalorder %s15, 0
    %p110 = por %p108, %p109
    %p111 = scmp.le.s32.totalorder 1, %s9
    %p112 = scmp.lt.s32.totalorder %s9, 3
    %p113 = pnand %p111, %p112
    %p114 = pneg %p113
    // Predicated region
    $region9: #{tpu_custom_call.1} parent=5 // pred_check
      _
    $region10: #{tpu_custom_call.1} parent=5 // pred_check_branch
      %116 = sbr.rel (%p113) target = $region12
    $region11: #{tpu_custom_call.1} parent=5 // pred_region
      %s117 = ssub.s32 %s9, 1
      // Predicated region
      $region13: #{tpu_custom_call.1} parent=11 // pred_check
        %p118 = pneg %p56
      $region14: #{tpu_custom_call.1} parent=11 // pred_check_branch
        %120 = sbr.rel (%p118) target = $region16
      $region15: #{tpu_custom_call.1} parent=11 // pred_region
        _
      $region16: #{tpu_custom_call.1} parent=11 // pred_fallthru
        _
      // Predicated region
      $region17: #{tpu_custom_call.1} parent=11 // pred_check
        %p121 = pneg %p77
      $region18: #{tpu_custom_call.1} parent=11 // pred_check_branch
        %123 = sbr.rel (%p121) target = $region20
      $region19: #{tpu_custom_call.1} parent=11 // pred_region
        _
      $region20: #{tpu_custom_call.1} parent=11 // pred_fallthru
        _
    $region12: #{tpu_custom_call.1} parent=5 // pred_fallthru
      _
    %p124 = scmp.lt.s32.totalorder %s9, 2
    // Predicated region
    $region21: #{tpu_custom_call.1} parent=5 // pred_check
      %p125 = pneg %p124
    $region22: #{tpu_custom_call.1} parent=5 // pred_check_branch
      %127 = sbr.rel (%p125) target = $region24
    $region23: #{tpu_custom_call.1} parent=5 // pred_region
      // Predicated region
      $region25: #{tpu_custom_call.1} parent=23 // pred_check
        %p128 = pneg %p29
      $region26: #{tpu_custom_call.1} parent=23 // pred_check_branch
        %130 = sbr.rel (%p128) target = $region28
      $region27: #{tpu_custom_call.1} parent=23 // pred_region
        %s131 = smul.u32 16, %s9
        %p132 = scmp.lt.s32.totalorder %s131, 31
        %s133 = scalar_select %p132, %s131, 31
        %s134 = smul.addr %s133, 8
        %s135 = scalar_lea.vmem %s0, %s134
        %s136 = smul.u32 16, %s9
      $region28: #{tpu_custom_call.1} parent=23 // pred_fallthru
        _
    $region24: #{tpu_custom_call.1} parent=5 // pred_fallthru
      _
    %p137 = scmp.le.s32.totalorder 1, %s9
    %p138 = scmp.lt.s32.totalorder %s9, 3
    %p139 = pnand %p137, %p138
    %p140 = pneg %p139
    // Predicated region
    $region29: #{tpu_custom_call.1} parent=5 // pred_check
      _
    $region30: #{tpu_custom_call.1} parent=5 // pred_check_branch
      %142 = sbr.rel (%p139) target = $region32
    $region31: #{tpu_custom_call.1} parent=5 // pred_region
      %s143 = ssub.s32 %s9, 1
      %s144 = smul.u32 16, %s14
      %p145 = scmp.lt.s32.totalorder %s144, 31
      %s146 = scalar_select %p145, %s144, 31
      %s147 = smul.addr %s146, 8
      %s148 = scalar_lea.vmem %s0, %s147
      %p149 = pneg %p35
      %p150 = pneg %p32
      %p151 = pneg %p56
      %p152 = pneg %p53
      %p153 = pneg %p77
      %p154 = pneg %p74
      %p155 = pneg %p103
      %p156 = pneg %p100
      %s157 = smul.u32 16, %s14
      %p158 = scmp.lt.s32.totalorder %s157, 31
      %s159 = scalar_select %p158, %s157, 31
      %s160 = smul.addr %s159, 8
      %s161 = scalar_lea.vmem %s3, %s160
      %s162 = smul.u32 16, %s14
      %p163 = scmp.lt.s32.totalorder %s162, 31
      %s164 = scalar_select %p163, %s162, 31
      %s165 = smul.addr %s164, 8
      %s166 = scalar_lea.vmem %s0, %s165
      %s167 = smul.u32 16, %s14
      %s168 = smul.u32 16, %s14
      %p169 = scmp.lt.s32.totalorder %s168, 31
      %s170 = scalar_select %p169, %s168, 31
      %s171 = smul.addr %s170, 8
      %s172 = scalar_lea.vmem %s3, %s171
      %s173 = smul.u32 16, %s14
      %v174 = vld [vmem:[%s166] sm:$0xff]
      %v175 = vld [vmem:[%s166 + $0x8] sm:$0xff]
      %v176 = vld [vmem:[%s166 + $0x10] sm:$0xff]
      %v177 = vld [vmem:[%s166 + $0x18] sm:$0xff]
      %v178 = vld [vmem:[%s166 + $0x20] sm:$0xff]
      %v179 = vld [vmem:[%s166 + $0x28] sm:$0xff]
      %v180 = vld [vmem:[%s166 + $0x30] sm:$0xff]
      %v181 = vld [vmem:[%s166 + $0x38] sm:$0xff]
      %v182 = vld [vmem:[%s166 + $0x40] sm:$0xff]
      %v183 = vld [vmem:[%s166 + $0x48] sm:$0xff]
      %v184 = vld [vmem:[%s166 + $0x50] sm:$0xff]
      %v185 = vld [vmem:[%s166 + $0x58] sm:$0xff]
      %v186 = vld [vmem:[%s166 + $0x60] sm:$0xff]
      %v187 = vld [vmem:[%s166 + $0x68] sm:$0xff]
      %v188 = vld [vmem:[%s166 + $0x70] sm:$0xff]
      %v189 = vld [vmem:[%s166 + $0x78] sm:$0xff]
      %v190 = vld [vmem:[%s1] sm:$0xff]
      %v191 = vld [vmem:[%s1 + $0x8] sm:$0x3]
      %v192 = vld [vmem:[%s2] sm:$0x1]
      %v194 = vperm.slane %v192, 0
      %vm196 = vcmask 80896
      %v198 = vsel %vm196, %v174, 0
      %v201 = vsel %vm196, %v175, 0
      %v204 = vsel %vm196, %v176, 0
      %v207 = vsel %vm196, %v177, 0
      %v210 = vsel %vm196, %v178, 0
      %v213 = vsel %vm196, %v179, 0
      %v216 = vsel %vm196, %v180, 0
      %v219 = vsel %vm196, %v181, 0
      %v222 = vsel %vm196, %v182, 0
      %v225 = vsel %vm196, %v183, 0
      %v228 = vsel %vm196, %v184, 0
      %v231 = vsel %vm196, %v185, 0
      %v234 = vsel %vm196, %v186, 0
      %v237 = vsel %vm196, %v187, 0
      %v240 = vsel %vm196, %v188, 0
      %v243 = vsel %vm196, %v189, 0
      %vm245 = vcmask 1041408
      %v247 = vsel %vm245, %v191, 0
      %249 = vmatpush.msra.mxu0 0.0
      %250 = vmatpush.msra.mxu0 0.0
      %251 = vmatpush.msra.mxu0 0.0
      %252 = vmatpush.msra.mxu0 0.0
      %253 = vmatpush.msra.mxu0 0.0
      %254 = vmatpush.msra.mxu0 0.0
      %255 = vmatpush.msra.mxu0 0.0
      %256 = vmatpush.msra.mxu0 0.0
      %257 = vmatpush.msra.mxu0 0.0
      %258 = vmatpush.msra.mxu0 0.0
      %259 = vmatpush.msra.mxu0 0.0
      %260 = vmatpush.msra.mxu0 0.0
      %261 = vmatpush.msra.mxu0 0.0
      %262 = vmatpush.msra.mxu0 0.0
      %263 = vmatpush.msra.mxu0 %v247
      %264 = vmatpush.msra.mxu0 %v190
      %265 = vmatmul.f32.gmra.mxu0 %v198
      %v266 = vpop.f32.mrf.mxu0
      %v267 = vadd.f32 %v194, %v266
      %268 = vmatmul.f32.gmra.mxu0 %v201
      %v269 = vpop.f32.mrf.mxu0
      %v270 = vadd.f32 %v194, %v269
      %271 = vmatmul.f32.gmra.mxu0 %v204
      %v272 = vpop.f32.mrf.mxu0
      %v273 = vadd.f32 %v194, %v272
      %274 = vmatmul.f32.gmra.mxu0 %v207
      %v275 = vpop.f32.mrf.mxu0
      %v276 = vadd.f32 %v194, %v275
      %277 = vmatmul.f32.gmra.mxu0 %v210
      %v278 = vpop.f32.mrf.mxu0
      %v279 = vadd.f32 %v194, %v278
      %280 = vmatmul.f32.gmra.mxu0 %v213
      %v281 = vpop.f32.mrf.mxu0
      %v282 = vadd.f32 %v194, %v281
      %283 = vmatmul.f32.gmra.mxu0 %v216
      %v284 = vpop.f32.mrf.mxu0
      %v285 = vadd.f32 %v194, %v284
      %286 = vmatmul.f32.gmra.mxu0 %v219
      %v287 = vpop.f32.mrf.mxu0
      %v288 = vadd.f32 %v194, %v287
      %289 = vmatmul.f32.gmra.mxu0 %v222
      %v290 = vpop.f32.mrf.mxu0
      %v291 = vadd.f32 %v194, %v290
      %292 = vmatmul.f32.gmra.mxu0 %v225
      %v293 = vpop.f32.mrf.mxu0
      %v294 = vadd.f32 %v194, %v293
      %295 = vmatmul.f32.gmra.mxu0 %v228
      %v296 = vpop.f32.mrf.mxu0
      %v297 = vadd.f32 %v194, %v296
      %298 = vmatmul.f32.gmra.mxu0 %v231
      %v299 = vpop.f32.mrf.mxu0
      %v300 = vadd.f32 %v194, %v299
      %301 = vmatmul.f32.gmra.mxu0 %v234
      %v302 = vpop.f32.mrf.mxu0
      %v303 = vadd.f32 %v194, %v302
      %304 = vmatmul.f32.gmra.mxu0 %v237
      %v305 = vpop.f32.mrf.mxu0
      %v306 = vadd.f32 %v194, %v305
      %307 = vmatmul.f32.gmra.mxu0 %v240
      %v308 = vpop.f32.mrf.mxu0
      %v309 = vadd.f32 %v194, %v308
      %310 = vmatmul.f32.gmra.mxu0 %v243
      %v311 = vpop.f32.mrf.mxu0
      %v312 = vadd.f32 %v194, %v311
      %313 = vdwg.mxu0
      %vm314 = vcmask 261120
      %315 = vst.msk [vmem:[%s172] sm:$0xff] %vm314, %v267
      %316 = vst.msk [vmem:[%s172 + $0x8] sm:$0xff] %vm314, %v270
      %317 = vst.msk [vmem:[%s172 + $0x10] sm:$0xff] %vm314, %v273
      %318 = vst.msk [vmem:[%s172 + $0x18] sm:$0xff] %vm314, %v276
      %319 = vst.msk [vmem:[%s172 + $0x20] sm:$0xff] %vm314, %v279
      %320 = vst.msk [vmem:[%s172 + $0x28] sm:$0xff] %vm314, %v282
      %321 = vst.msk [vmem:[%s172 + $0x30] sm:$0xff] %vm314, %v285
      %322 = vst.msk [vmem:[%s172 + $0x38] sm:$0xff] %vm314, %v288
      %323 = vst.msk [vmem:[%s172 + $0x40] sm:$0xff] %vm314, %v291
      %324 = vst.msk [vmem:[%s172 + $0x48] sm:$0xff] %vm314, %v294
      %325 = vst.msk [vmem:[%s172 + $0x50] sm:$0xff] %vm314, %v297
      %326 = vst.msk [vmem:[%s172 + $0x58] sm:$0xff] %vm314, %v300
      %327 = vst.msk [vmem:[%s172 + $0x60] sm:$0xff] %vm314, %v303
      %328 = vst.msk [vmem:[%s172 + $0x68] sm:$0xff] %vm314, %v306
      %329 = vst.msk [vmem:[%s172 + $0x70] sm:$0xff] %vm314, %v309
      %330 = vst.msk [vmem:[%s172 + $0x78] sm:$0xff] %vm314, %v312
      %s331 = smul.u32 16, %s14
      %p332 = scmp.lt.s32.totalorder %s331, 31
      %s333 = scalar_select %p332, %s331, 31
      %s334 = smul.addr %s333, 8
      %s335 = scalar_lea.vmem %s3, %s334
      // Predicated region
      $region33: #{tpu_custom_call.1} parent=31 // pred_check
        %p336 = pneg %p100
      $region34: #{tpu_custom_call.1} parent=31 // pred_check_branch
        %338 = sbr.rel (%p336) target = $region36
      $region35: #{tpu_custom_call.1} parent=31 // pred_region
        %s339 = smul.u32 16, %s14
      $region36: #{tpu_custom_call.1} parent=31 // pred_fallthru
        _
    $region32: #{tpu_custom_call.1} parent=5 // pred_fallthru
      _
    %p340 = scmp.le.s32.totalorder 2, %s9
    // Predicated region
    $region37: #{tpu_custom_call.1} parent=5 // pred_check
      %p341 = pneg %p340
    $region38: #{tpu_custom_call.1} parent=5 // pred_check_branch
      %343 = sbr.rel (%p341) target = $region40
    $region39: #{tpu_custom_call.1} parent=5 // pred_region
      %s344 = ssub.s32 %s9, 2
      // Predicated region
      $region41: #{tpu_custom_call.1} parent=39 // pred_check
        %p345 = pneg %p106
      $region42: #{tpu_custom_call.1} parent=39 // pred_check_branch
        %347 = sbr.rel (%p345) target = $region44
      $region43: #{tpu_custom_call.1} parent=39 // pred_region
        %s348 = smul.u32 16, %s15
        %p349 = scmp.lt.s32.totalorder %s348, 31
        %s350 = scalar_select %p349, %s348, 31
        %s351 = smul.addr %s350, 8
        %s352 = scalar_lea.vmem %s3, %s351
      $region44: #{tpu_custom_call.1} parent=39 // pred_fallthru
        _
    $region40: #{tpu_custom_call.1} parent=5 // pred_fallthru
      _
  $region6: #{tpu_custom_call.1} parent=0 // loop_footer
    %s13 = sadd.s32 1, %s9
  $region7: #{tpu_custom_call.1} parent=0 // loop_footer_branch
    %8 = sbr.rel target = $region3
  $region8: #{tpu_custom_call.1} parent=0 // loop_exit
    _

</llo_original>
